<compile_context>
chip_gen: v5e
topology: v5e:2x2
jax: 0.10.0
libtpu: 0.0.40
codegen_flags: <defaults>
</compile_context>

<pallas_src>
import functools

import jax
import jax.numpy as jnp
from jax import lax
from jax.experimental import pallas as pl
from jax.experimental.pallas import tpu as pltpu


def _rmsnorm_kernel(x_ref, w_ref, o_ref, *, eps: float):
    # Single f32 conversion of the tile; reused for both the reduction and the
    # scale pass (tiles are capped at 512 rows, so the f32 copy fits easily).
    x32 = x_ref[...].astype(jnp.float32)
    inv = lax.rsqrt(jnp.mean(x32 * x32, axis=-1, keepdims=True) + eps)
    # Match torch: _norm(x.float()).type_as(x), then * weight (promoting).
    normed = (x32 * inv).astype(x_ref.dtype)
    # w_ref is already in the output dtype (pre-cast in the wrapper), so this
    # multiply runs directly in the output precision.
    o_ref[...] = (normed.astype(o_ref.dtype) * w_ref[...]).astype(o_ref.dtype)


def _vmem_budget_and_limit():
    """(tile-sizing budget, vmem_limit_bytes) per TPU generation."""
    try:
        cap = int(pltpu.get_tpu_info().vmem_capacity_bytes)
    except Exception:
        cap = 64 * 1024 * 1024  # conservative (v7x-sized) fallback
    # ~1/2 of physical VMEM for our blocks (=> ~64 MiB on 128 MiB v5e/v6e,
    # ~32 MiB on 64 MiB v7x), with the scoped limit somewhat above that to
    # leave room for Mosaic internals without risking VMEM OOM on v7x.
    budget = min(cap // 2, 64 * 1024 * 1024)
    limit = min((cap * 5) // 8, 80 * 1024 * 1024)
    return budget, limit


def _num_tensorcores() -> int:
    """Best-effort TensorCore count; defaults to 2 (extra grid steps are ~free
    on 1-TC chips, and 2 keeps v7x megacore sharding balanced)."""
    try:
        info = pltpu.get_tpu_info()
        for attr in ("num_cores", "tensorcore_count", "core_count"):
            n = getattr(info, attr, None)
            if n:
                return max(int(n), 1)
    except Exception:
        pass
    return 2


def _pick_block_rows(rows: int, dim: int, in_dtype, out_dtype,
                     vmem_budget: int, num_cores: int) -> int:
    in_b = jnp.dtype(in_dtype).itemsize
    out_b = jnp.dtype(out_dtype).itemsize
    # Sublane-packing multiple: 8 for 32-bit, 16 for bf16, 32 for int8/fp8.
    mult = 8 * max(1, 4 // in_b)
    if rows <= mult:
        return rows  # full-extent block is legal

    # Per-row VMEM bytes: double-buffered in + out blocks, plus ~8 B/elem of
    # single-buffered f32 intermediates (x32 copy + product before the cast).
    per_row = dim * (2 * (in_b + out_b) + 8)
    br_cap = max(min(vmem_budget // per_row, 512), mult)
    br_cap = max((br_cap // mult) * mult, mult)

    # Target >= 4 grid steps per TensorCore so the software pipeline reaches a
    # steady state, and a step count that is a multiple of the core count so
    # megacore sharding is balanced (no idle-core tail on v7x).
    min_steps = 4 * num_cores
    steps = max(pl.cdiv(rows, br_cap), min_steps)
    if num_cores > 1:
        steps = -(-steps // num_cores) * num_cores

    br = -(-rows // steps)                    # ceil(rows / steps)
    br = max(-(-br // mult) * mult, mult)     # round up to packing multiple
    br = min(br, br_cap)
    return br


def rmsnorm(x: jax.Array, weight: jax.Array, eps: float = 1e-6,
            out_dtype=None) -> jax.Array:
    """RMSNorm over the last axis of `x`, scaled by `weight` (shape (dim,)).

    `out_dtype=None` (default) follows torch's promotion
    (result_type(x.dtype, weight.dtype)).  Passing e.g. `out_dtype=x.dtype`
    is an opt-in fast path that keeps bf16 outputs for bf16 activations with
    f32 weights, cutting HBM write traffic roughly in half.
    """
    orig_shape = x.shape
    dim = orig_shape[-1]
    assert weight.shape == (dim,)
    # TODO(synk): if dim is ever not a multiple of 128 (or < 128), pad the
    # lane axis / fold rows into lanes to avoid masked partial stores; llama
    # dims (>=2048) are lane-dense already.

    rows = 1
    for s in orig_shape[:-1]:
        rows *= s
    x2d = x.reshape(rows, dim)

    if out_dtype is None:
        out_dtype = jnp.result_type(x.dtype, weight.dtype)
    # Pre-cast the (resident) weight to the output dtype once in the wrapper
    # instead of promoting a (1, dim) -> (br, dim) broadcast every grid step.
    w2d = weight.reshape(1, dim).astype(out_dtype)

    in_b = jnp.dtype(x.dtype).itemsize
    out_b = jnp.dtype(out_dtype).itemsize
    w_b = jnp.dtype(out_dtype).itemsize

    vmem_budget, vmem_limit = _vmem_budget_and_limit()
    num_cores = _num_tensorcores()
    br = _pick_block_rows(rows, dim, x.dtype, out_dtype, vmem_budget, num_cores)
    grid = (pl.cdiv(rows, br),)

    cost = pl.CostEstimate(
        flops=4 * rows * dim,          # square + reduce + scale + weight mul
        transcendentals=rows,
        bytes_accessed=rows * dim * (in_b + out_b) + dim * w_b,
    )

    out2d = pl.pallas_call(
        functools.partial(_rmsnorm_kernel, eps=eps),
        out_shape=jax.ShapeDtypeStruct((rows, dim), out_dtype),
        grid_spec=pltpu.PrefetchScalarGridSpec(
            num_scalar_prefetch=0,
            grid=grid,
            in_specs=[
                pl.BlockSpec((br, dim), lambda i: (i, 0)),
                pl.BlockSpec((1, dim), lambda i: (0, 0)),   # weight stays resident
            ],
            out_specs=pl.BlockSpec((br, dim), lambda i: (i, 0)),
        ),
        compiler_params=pltpu.CompilerParams(
            dimension_semantics=("parallel",),
            vmem_limit_bytes=vmem_limit,
        ),
        cost_estimate=cost,
    )(x2d, w2d)

    return out2d.reshape(orig_shape[:-1] + (dim,))


def rmsnorm_ref(x, weight, eps=1e-6):
    x32 = x.astype(jnp.float32)
    normed = x32 * lax.rsqrt(jnp.mean(x32 * x32, axis=-1, keepdims=True) + eps)
    return normed.astype(x.dtype) * weight


if __name__ == "__main__":
    key = jax.random.PRNGKey(0)
    batch, seq, dim = 2, 8, 128

    x = jax.random.normal(key, (batch, seq, dim), dtype=jnp.float32)
    # Deterministic parameter init matching nn.Parameter(torch.ones(dim)).
    weight = jnp.ones((dim,), dtype=jnp.float32)
    eps = 1e-6

    # f32 activations.
    out = jax.block_until_ready(rmsnorm(x, weight, eps))
    ref = rmsnorm_ref(x, weight, eps)
    assert out.shape == x.shape, (out.shape, x.shape)
    assert out.dtype == ref.dtype, (out.dtype, ref.dtype)
    assert jnp.allclose(out, ref, atol=1e-5, rtol=1e-5), "f32 mismatch vs reference"

    # bf16 activations with f32 weight (common serving config; exercises the
    # packed-dtype tile sizing and dtype-promotion path).
    xb = x.astype(jnp.bfloat16)
    outb = jax.block_until_ready(rmsnorm(xb, weight, eps))
    refb = rmsnorm_ref(xb, weight, eps)
    assert outb.shape == xb.shape
    assert outb.dtype == refb.dtype, (outb.dtype, refb.dtype)
    assert jnp.allclose(outb.astype(jnp.float32), refb.astype(jnp.float32),
                        atol=5e-2, rtol=5e-2), "bf16 mismatch vs reference"

    # Opt-in fast path: keep bf16 outputs for bf16 inputs (less HBM traffic).
    outb_fast = jax.block_until_ready(rmsnorm(xb, weight, eps, out_dtype=xb.dtype))
    assert outb_fast.dtype == xb.dtype
    assert jnp.allclose(outb_fast.astype(jnp.float32), refb.astype(jnp.float32),
                        atol=5e-2, rtol=5e-2), "bf16 fast-path mismatch vs reference"

    print("KERNEL_OK")
</pallas_src>

<mosaic_0001>
module attributes {stable_mosaic.version = 11 : i64} {
  func.func @_rmsnorm_kernel(%arg0: i32, %arg1: memref<8x128xf32, #tpu.memory_space<vmem>>, %arg2: memref<1x128xf32, #tpu.memory_space<vmem>>, %arg3: memref<8x128xf32, #tpu.memory_space<vmem>>) attributes {dimension_semantics = [#tpu.dimension_semantics<parallel>], iteration_bounds = array<i64: 2>, scalar_prefetch = 0 : i64, scratch_operands = 0 : i64, tpu.core_type = #tpu.core_type<tc>, window_params = [{transform_indices = @transform_0, window_bounds = array<i64: 8, 128>}, {pipeline_mode = #tpu.pipeline_mode<synchronous>, transform_indices = @transform_1, window_bounds = array<i64: 1, 128>}, {transform_indices = @transform_2, window_bounds = array<i64: 8, 128>}]} {
    %c0 = arith.constant 0 : index
    %c0_0 = arith.constant 0 : index
    %0 = vector.load %arg1[%c0, %c0_0] : memref<8x128xf32, #tpu.memory_space<vmem>>, vector<8x128xf32>
    %1 = arith.mulf %0, %0 : vector<8x128xf32>
    %cst = arith.constant dense<0.000000e+00> : vector<8xf32>
    %2 = vector.multi_reduction <add>, %1, %cst [1] : vector<8x128xf32> to vector<8xf32>
    %3 = vector.shape_cast %2 : vector<8xf32> to vector<8x1xf32>
    %cst_1 = arith.constant 1.280000e+02 : f32
    %4 = vector.broadcast %cst_1 : f32 to vector<8x1xf32>
    %5 = arith.divf %3, %4 : vector<8x1xf32>
    %cst_2 = arith.constant 9.99999997E-7 : f32
    %6 = vector.broadcast %cst_2 : f32 to vector<8x1xf32>
    %7 = arith.addf %5, %6 : vector<8x1xf32>
    %8 = math.rsqrt %7 : vector<8x1xf32>
    %9 = vector.broadcast %8 : vector<8x1xf32> to vector<8x128xf32>
    %10 = arith.mulf %0, %9 : vector<8x128xf32>
    %c0_3 = arith.constant 0 : index
    %c0_4 = arith.constant 0 : index
    %11 = vector.load %arg2[%c0_3, %c0_4] : memref<1x128xf32, #tpu.memory_space<vmem>>, vector<1x128xf32>
    %12 = vector.broadcast %11 : vector<1x128xf32> to vector<8x128xf32>
    %13 = arith.mulf %10, %12 : vector<8x128xf32>
    %c0_5 = arith.constant 0 : index
    %c0_6 = arith.constant 0 : index
    %14 = vector.load %arg3[%c0_5, %c0_6] : memref<8x128xf32, #tpu.memory_space<vmem>>, vector<8x128xf32>
    tpu.vector_store %arg3[%c0_5, %c0_6], %13 {strides = array<i32>} : memref<8x128xf32, #tpu.memory_space<vmem>>, vector<8x128xf32>,
    return
  }
  func.func @transform_0(%arg0: i32) -> (i32, i32) {
    %c0_i32 = arith.constant 0 : i32
    %c0_i32_0 = arith.constant 0 : i32
    return %arg0, %c0_i32 : i32, i32
  }
  func.func @transform_1(%arg0: i32) -> (i32, i32) {
    %c0_i32 = arith.constant 0 : i32
    %c0_i32_0 = arith.constant 0 : i32
    %c0_i32_1 = arith.constant 0 : i32
    return %c0_i32, %c0_i32_0 : i32, i32
  }
  func.func @transform_2(%arg0: i32) -> (i32, i32) {
    %c0_i32 = arith.constant 0 : i32
    %c0_i32_0 = arith.constant 0 : i32
    return %arg0, %c0_i32 : i32, i32
  }
}

</mosaic_0001>

<llo_original>
// kernel: tpu_custom_call.1
$region0: #{tpu_custom_call.1}
  #allocation0 [shape = 'u32[]', space=smem, size = 0x4, offset = 0x4, fixed_abs, tag = 'smem constant byte address 0x4 - core index']
  #allocation1 [shape = 'u32[72,128]{1,0:T(1,128)}', space=vmem, size = 0x9000, scoped, tag = 'internal scratch']
  %s0 = inlined_call_operand.hbm [shape: f32[16,128], index: 0, kind: input, shape index: {}]
  %s1 = inlined_call_operand.hbm [shape: f32[1,128], index: 1, kind: input, shape index: {}]
  %s2 = inlined_call_operand.hbm [shape: f32[16,128], index: 2, kind: output, shape index: {}]
  %s3 = sld [smem:[#allocation0]]
  $region49: #{tpu_custom_call.1} parent=0
    _
  %s5 = ssub.s32 1, %s3
  %s6 = scalar_select 0, %s5, %s3
  $region1: #{tpu_custom_call.1} parent=0
    #allocation2 [shape = 'u8[8192]{0}', space=vmem, size = 0x2000, scoped, tag = 'input window, operand 0']
    #allocation3 [shape = 's32[2]{0}', space=sflag, size = 0x8, scoped, tag = 'scoped memory for tpu_custom_call.1']
    #allocation4 [shape = 's32[2]{0}', space=sflag, size = 0x8, scoped, tag = 'scoped memory for tpu_custom_call.1']
    #allocation5 [shape = 'u8[512]{0}', space=vmem, size = 0x400, scoped, tag = 'input window, operand 1, single buffered']
    #allocation6 [shape = 's32[1]{0}', space=sflag, size = 0x4, scoped, tag = 'scoped memory for tpu_custom_call.1']
    #allocation7 [shape = 'u8[8192]{0}', space=vmem, size = 0x2000, scoped, tag = 'output window, operand 0']
    %7 = vsyncpa [#allocation3], 0
    %s8 = scalar_lea.sflag [#allocation3], 1
    %9 = vsyncpa %s8, 0
    %10 = vsyncpa [#allocation6], 0
    %11 = vsyncpa [#allocation4], 0
    %s12 = scalar_lea.sflag [#allocation4], 1
    %13 = vsyncpa %s12, 0
    loop: start=0, step=1, limit=4
    $region2: #{tpu_custom_call.1} parent=1 // loop_pre_header
      _
    $region3: #{tpu_custom_call.1} parent=1 // loop_header
      %s15 = sphi 0, %s19
      %p16 = scmp.ge.s32.totalorder %s15, 4
      %s25 = sphi 0, %s27
      %s28 = sphi 0, %s25
      %s29 = sphi 0, %s28
      %s45 = sphi 0, %s29
      %s49 = sphi 0, %s49
      %s51 = sphi 0, %s49
      %s52 = sphi 0, %s51
      %s66 = sphi 0, %s52
      %s72 = sphi 0, %s74
      %s75 = sphi 0, %s72
      %s76 = sphi 0, %s75
      %s92 = sphi 0, %s76
    $region4: #{tpu_custom_call.1} parent=1 // loop_header_branch
      %18 = sbr.rel (%p16) target = $region8
    $region5: #{tpu_custom_call.1} parent=1 // loop_body
      %s20 = ssub.s32 %s15, 1
      %s21 = ssub.s32 %s15, 2
      %s22 = sadd.s32 %s15, 1
      %s23 = ssub.s32 %s15, %s22
      %p24 = scmp.eq.s32.totalorder %s23, 0
      %s26 = sadd.s32 %s25, 1
      %s27 = scalar_select %p24, %s25, %s26
      %p30 = pneg %p24
      %p31 = scmp.eq.s32.totalorder %s15, 1
      %p32 = por %p30, %p31
      %p33 = scmp.ne.s32.totalorder %s25, %s28
      %p34 = scmp.eq.s32.totalorder %s15, 0
      %p35 = por %p33, %p34
      %p36 = scmp.ne.s32.totalorder %s25, %s28
      %p37 = scmp.eq.s32.totalorder %s20, 1
      %p38 = por %p36, %p37
      %p39 = scmp.ne.s32.totalorder %s28, %s29
      %p40 = scmp.eq.s32.totalorder %s20, 0
      %p41 = por %p39, %p40
      %p42 = scmp.ne.s32.totalorder %s28, %s29
      %p43 = scmp.eq.s32.totalorder %s21, 1
      %p44 = por %p42, %p43
      %p46 = scmp.ne.s32.totalorder %s29, %s45
      %p47 = scmp.eq.s32.totalorder %s21, 0
      %p48 = por %p46, %p47
      %s50 = sadd.s32 %s49, 1
      %p53 = scmp.eq.s32.totalorder %s15, 1
      %p54 = scmp.ne.s32.totalorder %s49, %s51
      %p55 = scmp.eq.s32.totalorder %s15, 0
      %p56 = por %p54, %p55
      %p57 = scmp.ne.s32.totalorder %s49, %s51
      %p58 = scmp.eq.s32.totalorder %s20, 1
      %p59 = por %p57, %p58
      %p60 = scmp.ne.s32.totalorder %s51, %s52
      %p61 = scmp.eq.s32.totalorder %s20, 0
      %p62 = por %p60, %p61
      %p63 = scmp.ne.s32.totalorder %s51, %s52
      %p64 = scmp.eq.s32.totalorder %s21, 1
      %p65 = por %p63, %p64
      %p67 = scmp.ne.s32.totalorder %s52, %s66
      %p68 = scmp.eq.s32.totalorder %s21, 0
      %p69 = por %p67, %p68
      %s70 = ssub.s32 %s15, %s22
      %p71 = scmp.eq.s32.totalorder %s70, 0
      %s73 = sadd.s32 %s72, 1
      %s74 = scalar_select %p71, %s72, %s73
      %p77 = pneg %p71
      %p78 = scmp.eq.s32.totalorder %s15, 1
      %p79 = por %p77, %p78
      %p80 = scmp.ne.s32.totalorder %s72, %s75
      %p81 = scmp.eq.s32.totalorder %s15, 0
      %p82 = por %p80, %p81
      %p83 = scmp.ne.s32.totalorder %s72, %s75
      %p84 = scmp.eq.s32.totalorder %s20, 1
      %p85 = por %p83, %p84
      %p86 = scmp.ne.s32.totalorder %s75, %s76
      %p87 = scmp.eq.s32.totalorder %s20, 0
      %p88 = por %p86, %p87
      %p89 = scmp.ne.s32.totalorder %s75, %s76
      %p90 = scmp.eq.s32.totalorder %s21, 1
      %p91 = por %p89, %p90
      %p93 = scmp.ne.s32.totalorder %s76, %s92
      %p94 = scmp.eq.s32.totalorder %s21, 0
      %p95 = por %p93, %p94
      %p96 = scmp.le.s32.totalorder 1, %s15
      %p97 = scmp.lt.s32.totalorder %s15, 3
      %p98 = pnand %p96, %p97
      %p99 = pneg %p98
      // Predicated region
      $region9: #{tpu_custom_call.1} parent=5 // pred_check
        _
      $region10: #{tpu_custom_call.1} parent=5 // pred_check_branch
        %101 = sbr.rel (%p98) target = $region12
      $region11: #{tpu_custom_call.1} parent=5 // pred_region
        %s102 = ssub.s32 %s15, 1
        // Predicated region
        $region13: #{tpu_custom_call.1} parent=11 // pred_check
          %p103 = pneg %p62
        $region14: #{tpu_custom_call.1} parent=11 // pred_check_branch
          %105 = sbr.rel (%p103) target = $region16
        $region15: #{tpu_custom_call.1} parent=11 // pred_region
          %107 = vsyncadd [#allocation6], 0
          %s109 = sshll.u32 %s1, 4
          %s110 = int_to_ptr.hbm [resolvable:$true] %s109
          %s111 = sshll.u32 [#allocation5], 4
          %s112 = int_to_ptr.vmem [resolvable:$true] %s111
          %114 = dma.hbm_to_vmem [thread:$0]  %s110, 16, %s112, [#allocation6]
        $region16: #{tpu_custom_call.1} parent=11 // pred_fallthru
          _
      $region12: #{tpu_custom_call.1} parent=5 // pred_fallthru
        _
      %p115 = scmp.lt.s32.totalorder %s15, 2
      // Predicated region
      $region17: #{tpu_custom_call.1} parent=5 // pred_check
        %p116 = pneg %p115
      $region18: #{tpu_custom_call.1} parent=5 // pred_check_branch
        %118 = sbr.rel (%p116) target = $region20
      $region19: #{tpu_custom_call.1} parent=5 // pred_region
        // Predicated region
        $region21: #{tpu_custom_call.1} parent=19 // pred_check
          %p119 = pneg %p35
        $region22: #{tpu_custom_call.1} parent=19 // pred_check_branch
          %121 = sbr.rel (%p119) target = $region24
        $region23: #{tpu_custom_call.1} parent=19 // pred_region
          %s122 = sand.u32 %s25, 1
          %s123 = scalar_lea.sflag [#allocation3], %s122
          %s124 = sand.u32 %s25, 1
          %s125 = smul.addr %s124, 8
          %s126 = scalar_lea.vmem [#allocation2], %s125
          %128 = vsyncadd %s123, 0
          %s129 = smul.addr %s15, 8
          %s130 = scalar_lea.hbm %s0, %s129
          %s132 = sshll.u32 %s130, 4
          %s133 = int_to_ptr.hbm [resolvable:$true] %s132
          %s134 = sshll.u32 %s126, 4
          %s135 = int_to_ptr.vmem [resolvable:$true] %s134
          %137 = dma.hbm_to_vmem [thread:$0]  %s133, 128, %s135, %s123
        $region24: #{tpu_custom_call.1} parent=19 // pred_fallthru
          _
      $region20: #{tpu_custom_call.1} parent=5 // pred_fallthru
        _
      %p138 = scmp.le.s32.totalorder 1, %s15
      %p139 = scmp.lt.s32.totalorder %s15, 3
      %p140 = pnand %p138, %p139
      %p141 = pneg %p140
      // Predicated region
      $region25: #{tpu_custom_call.1} parent=5 // pred_check
        _
      $region26: #{tpu_custom_call.1} parent=5 // pred_check_branch
        %143 = sbr.rel (%p140) target = $region28
      $region27: #{tpu_custom_call.1} parent=5 // pred_region
        %s144 = ssub.s32 %s15, 1
        %s145 = sand.u32 %s28, 1
        %s146 = scalar_lea.sflag [#allocation3], %s145
        %s147 = sand.u32 %s28, 1
        %s148 = smul.addr %s147, 8
        %s149 = scalar_lea.vmem [#allocation2], %s148
        // Predicated region
        $region29: #{tpu_custom_call.1} parent=27 // pred_check
          %p150 = pneg %p41
        $region30: #{tpu_custom_call.1} parent=27 // pred_check_branch
          %152 = sbr.rel (%p150) target = $region32
        $region31: #{tpu_custom_call.1} parent=27 // pred_region
          %154 = dma.done %s146, 128
        $region32: #{tpu_custom_call.1} parent=27 // pred_fallthru
          _
        // Predicated region
        $region33: #{tpu_custom_call.1} parent=27 // pred_check
          %p155 = pneg %p62
        $region34: #{tpu_custom_call.1} parent=27 // pred_check_branch
          %157 = sbr.rel (%p155) target = $region36
        $region35: #{tpu_custom_call.1} parent=27 // pred_region
          %159 = dma.done [#allocation6], 16
        $region36: #{tpu_custom_call.1} parent=27 // pred_fallthru
          _
        %s160 = sand.u32 %s28, 1
        %s161 = scalar_lea.sflag [#allocation3], %s160
        %s162 = sand.u32 %s28, 1
        %s163 = smul.addr %s162, 8
        %s164 = scalar_lea.vmem [#allocation2], %s163
        %p165 = pneg %p41
        %p166 = pneg %p38
        %p167 = pneg %p62
        %p168 = pneg %p59
        %p169 = pneg %p88
        %p170 = pneg %p85
        %s171 = sand.u32 %s75, 1
        %s172 = scalar_lea.sflag [#allocation4], %s171
        %s173 = sand.u32 %s75, 1
        %s174 = smul.addr %s173, 8
        %s175 = scalar_lea.vmem [#allocation7], %s174
        %v176 = vld [vmem:[%s149] sm:$0xff]
        %v177 = vmul.f32 %v176, %v176
        %178 = vadd.xlane.f32.xlu0 %v177
        %v179 = vpop.xlane.xlu0 %178
        %v180 = vrcp.pop 128.0
        %v181 = vmul.f32 128.0, %v180
        %v182 = vsub.f32 1.0, %v181
        %v183 = vmul.f32 %v180, %v182
        %v184 = vadd.f32 %v180, %v183
        %vm185 = vweird.f32 %v180
        %v186 = vsel %vm185, %v180, %v184
        %v187 = vmul.f32 %v179, %v186
        %v188 = vadd.f32 %v187, 1e-06
        %v189 = vrsqrt.pop %v188
        %v190 = vmul.f32 %v189, %v188
        %v191 = vmul.f32 %v190, %v189
        %v192 = vmul.f32 0.5, %v191
        %v193 = vsub.f32 1.5, %v192
        %v194 = vmul.f32 %v189, %v193
        %vm195 = vweird.f32 %v188
        %vm196 = vweird.f32 %v189
        %vm197 = vmor %vm195, %vm196
        %v198 = vsel %vm197, %v189, %v194
        %v199 = vmul.f32 %v176, %v198
        %v200 = vld [vmem:[#allocation5] sm:$0x1]
        %v202 = vperm.slane %v200, 0
        %v204 = vmul.f32 %v199, %v202
        %205 = vst [vmem:[%s175] sm:$0xff] %v204
        %s206 = sand.u32 %s75, 1
        %s207 = scalar_lea.sflag [#allocation4], %s206
        %s208 = sand.u32 %s75, 1
        %s209 = smul.addr %s208, 8
        %s210 = scalar_lea.vmem [#allocation7], %s209
        // Predicated region
        $region37: #{tpu_custom_call.1} parent=27 // pred_check
          %p211 = pneg %p85
        $region38: #{tpu_custom_call.1} parent=27 // pred_check_branch
          %213 = sbr.rel (%p211) target = $region40
        $region39: #{tpu_custom_call.1} parent=27 // pred_region
          %215 = vsyncadd %s207, 0
          %s216 = smul.addr %s20, 8
          %s217 = scalar_lea.hbm %s2, %s216
          %s219 = sshll.u32 %s210, 4
          %s220 = int_to_ptr.vmem [resolvable:$true] %s219
          %s221 = sshll.u32 %s217, 4
          %s222 = int_to_ptr.hbm [resolvable:$true] %s221
          %224 = dma.vmem_to_hbm [thread:$0]  %s220, 128, %s222, %s207
        $region40: #{tpu_custom_call.1} parent=27 // pred_fallthru
          _
      $region28: #{tpu_custom_call.1} parent=5 // pred_fallthru
        _
      %p225 = scmp.le.s32.totalorder 2, %s15
      // Predicated region
      $region41: #{tpu_custom_call.1} parent=5 // pred_check
        %p226 = pneg %p225
      $region42: #{tpu_custom_call.1} parent=5 // pred_check_branch
        %228 = sbr.rel (%p226) target = $region44
      $region43: #{tpu_custom_call.1} parent=5 // pred_region
        %s229 = ssub.s32 %s15, 2
        // Predicated region
        $region45: #{tpu_custom_call.1} parent=43 // pred_check
          %p230 = pneg %p91
        $region46: #{tpu_custom_call.1} parent=43 // pred_check_branch
          %232 = sbr.rel (%p230) target = $region48
        $region47: #{tpu_custom_call.1} parent=43 // pred_region
          %s233 = sand.u32 %s76, 1
          %s234 = scalar_lea.sflag [#allocation4], %s233
          %s235 = sand.u32 %s76, 1
          %s236 = smul.addr %s235, 8
          %s237 = scalar_lea.vmem [#allocation7], %s236
          %239 = dma.done %s234, 128
        $region48: #{tpu_custom_call.1} parent=43 // pred_fallthru
          _
      $region44: #{tpu_custom_call.1} parent=5 // pred_fallthru
        _
    $region6: #{tpu_custom_call.1} parent=1 // loop_footer
      %s19 = sadd.s32 1, %s15
    $region7: #{tpu_custom_call.1} parent=1 // loop_footer_branch
      %14 = sbr.rel target = $region3
    $region8: #{tpu_custom_call.1} parent=1 // loop_exit
      _
    %240 = vsyncpa [#allocation3], 1
    %s241 = scalar_lea.sflag [#allocation3], 1
    %242 = vsyncpa %s241, 1
    %243 = vsyncpa [#allocation6], 1
    %244 = vsyncpa [#allocation4], 1
    %s245 = scalar_lea.sflag [#allocation4], 1
    %246 = vsyncpa %s245, 1

</llo_original>
